<compile_context>
chip_gen: v6e
topology: v6e:2x2x1
jax: 0.10.0
libtpu: 0.0.40
codegen_flags: <defaults>
</compile_context>

<pallas_src>
import functools

import numpy as np

import jax
import jax.numpy as jnp
from jax import lax
from jax.experimental import pallas as pl
from jax.experimental.pallas import tpu as pltpu


def _loss_kernel(params_ref, labels_ref, out_ref, *rest,
                 B, V, TB, TV, n_labels, with_kl2):
    """One (TB, TV) tile of the fused label-smoothing KL loss.

    params_ref : (TB, 5) f32  [c1*fill, c1*on, c1*fill*log(fill), c1*on*log(on), c2]
    labels_ref : (TB, L) i32  label indices, padded with -1
    out_ref    : (TB, TV)     log-probs (model output)
    outm_ref   : (TB, TV)     log-probs (momentum/teacher output), mode '3'/'4' only
    partial    : (1, 1, 128) f32 lane-dense partial sums per batch tile
    acc        : (TB, 128) f32 VMEM scratch accumulator
    """
    if with_kl2:
        outm_ref, partial_ref, acc_ref = rest
    else:
        partial_ref, acc_ref = rest

    i = pl.program_id(0)
    k = pl.program_id(1)
    nk = pl.num_programs(1)

    @pl.when(k == 0)
    def _init():
        acc_ref[...] = jnp.zeros_like(acc_ref)

    out = out_ref[...].astype(jnp.float32)

    # Global vocab index of every element of this tile.
    col = k * TV + lax.broadcasted_iota(jnp.int32, (TB, TV), 1)

    # Reconstruct the label-smoothing target in-kernel (no dense dist stream).
    is_label = jnp.zeros((TB, TV), dtype=jnp.bool_)
    for l in range(n_labels):                      # L is small & static
        is_label = jnp.logical_or(is_label, labels_ref[:, l:l + 1] == col)

    fill = params_ref[:, 0:1]        # c1 * fill
    on = params_ref[:, 1:2]          # c1 * on
    ent_fill = params_ref[:, 2:3]    # c1 * fill*log(fill)   (0 if fill == 0)
    ent_on = params_ref[:, 3:4]      # c1 * on*log(on)

    dist = jnp.where(is_label, on, fill)           # c1 * dist
    ent = jnp.where(is_label, ent_on, ent_fill)    # c1 * dist*log(dist)
    combined = ent - dist * out                    # c1 * dist*(log(dist)-out)

    if with_kl2:
        outm = outm_ref[...].astype(jnp.float32)
        # KLDiv(input=exp(out), target=exp(outm)) = exp(outm)*(outm - exp(out))
        kl2 = jnp.exp(outm) * (outm - jnp.exp(out))
        combined = combined + params_ref[:, 4:5] * kl2   # + c2 * kl2

    # Mask padded edge elements (Pallas pads partial tiles with garbage).
    if (B % TB) or (V % TV):
        row = i * TB + lax.broadcasted_iota(jnp.int32, (TB, TV), 0)
        valid = jnp.logical_and(row < B, col < V)
        combined = jnp.where(valid, combined, 0.0)

    # Fold TV lanes into the lane-dense (TB, 128) accumulator with
    # vreg-aligned 128-wide slices (pure VPU adds, no relayout).
    acc = acc_ref[...]
    for c in range(TV // 128):
        acc = acc + combined[:, c * 128:(c + 1) * 128]
    acc_ref[...] = acc

    @pl.when(k == nk - 1)
    def _finalize():
        partial_ref[0] = jnp.sum(acc_ref[...], axis=0, keepdims=True)


def _round_up(x, m):
    return (x + m - 1) // m * m


@functools.partial(jax.jit, static_argnames=("with_kl2",))
def _loss_pallas(coef, row_params, labels, output, output_m, *, with_kl2):
    B, V = output.shape
    L = labels.shape[1]

    # Tile sizes: big enough to hit the HBM roofline, small enough that
    # double-buffered inputs + elementwise temporaries fit v7x's 64 MiB VMEM.
    TB = B if B <= 256 else 256
    TV = min(_round_up(V, 128), 1024)
    nb = pl.cdiv(B, TB)
    nv = pl.cdiv(V, TV)

    # Fold the mixing coefficients into per-row params so no SMEM scalar is
    # needed inside the kernel: col 0..3 scaled by c1, col 4 = c2.
    c1 = coef[0].astype(jnp.float32)
    c2 = coef[1].astype(jnp.float32)
    params = jnp.concatenate(
        [row_params.astype(jnp.float32) * c1,
         jnp.full((B, 1), 1.0, jnp.float32) * c2],
        axis=1)  # (B, 5)

    kernel = functools.partial(
        _loss_kernel, B=B, V=V, TB=TB, TV=TV, n_labels=L, with_kl2=with_kl2)

    in_specs = [
        pl.BlockSpec((TB, 5), lambda i, k: (i, 0)),
        pl.BlockSpec((TB, L), lambda i, k: (i, 0)),
        pl.BlockSpec((TB, TV), lambda i, k: (i, k)),
    ]
    args = [params, labels, output]
    if with_kl2:
        in_specs.append(pl.BlockSpec((TB, TV), lambda i, k: (i, k)))
        args.append(output_m)

    partials = pl.pallas_call(
        kernel,
        out_shape=jax.ShapeDtypeStruct((nb, 1, 128), jnp.float32),
        grid_spec=pltpu.PrefetchScalarGridSpec(
            num_scalar_prefetch=0,
            grid=(nb, nv),
            in_specs=in_specs,
            out_specs=pl.BlockSpec((1, 1, 128), lambda i, k: (i, 0, 0)),
            scratch_shapes=[pltpu.VMEM((TB, 128), jnp.float32)],
        ),
        compiler_params=pltpu.CompilerParams(
            dimension_semantics=("parallel", "arbitrary"),
            vmem_limit_bytes=48 * 1024 * 1024,
        ),
    )(*args)

    # Tiny final reduction of lane-dense partials.
    return jnp.sum(partials)


class LossCompute:
    """JAX/Pallas port of Loss_Compute (criterion = KLDivLoss(reduction='sum'))."""

    def __init__(self, len_vocab, smoothing=0.0):
        self.len_vocab = int(len_vocab)
        self.smoothing = float(smoothing)

    def _pack_labels(self, batch_labels):
        B = len(batch_labels)
        L = max(1, max(len(ls) for ls in batch_labels))
        lab = np.full((B, L), -1, dtype=np.int32)
        lengths = np.zeros((B,), dtype=np.float32)
        for b, ls in enumerate(batch_labels):
            n = len(ls)
            lab[b, :n] = np.asarray(ls, dtype=np.int32)
            lengths[b] = n
        return jnp.asarray(lab), jnp.asarray(lengths)

    def _row_params(self, lengths):
        V = float(self.len_vocab)
        s = self.smoothing
        fill = s / (V - lengths)
        on = (1.0 - s) / lengths
        safe_fill = jnp.where(fill > 0, fill, 1.0)
        safe_on = jnp.where(on > 0, on, 1.0)
        ent_fill = jnp.where(fill > 0, fill * jnp.log(safe_fill), 0.0)
        ent_on = jnp.where(on > 0, on * jnp.log(safe_on), 0.0)
        return jnp.stack([fill, on, ent_fill, ent_on], axis=1).astype(jnp.float32)

    def build_dists(self, batch_labels):
        """Dense (B, V) targets — reference/debugging only (never streamed)."""
        dists = []
        for ls in batch_labels:
            ls = jnp.asarray(ls, dtype=jnp.int32)
            n = ls.shape[0]
            fill = self.smoothing / (self.len_vocab - n)
            d = jnp.full((self.len_vocab,), fill, dtype=jnp.float32)
            d = d.at[ls].set((1.0 - self.smoothing) / n)
            dists.append(d)
        return jnp.stack(dists, axis=0)

    def __call__(self, mode, output, output_m, batch_labels, alpha=0.02):
        labels, lengths = self._pack_labels(batch_labels)
        row_params = self._row_params(lengths)
        with_kl2 = mode in ("3", "4")
        if with_kl2:
            coef = jnp.array([1.0 - alpha, alpha], dtype=jnp.float32)
            om = output_m
        else:
            coef = jnp.array([1.0, 0.0], dtype=jnp.float32)
            om = None  # kernel variant for this mode never touches output_m
        return _loss_pallas(coef, row_params, labels, output, om,
                            with_kl2=with_kl2)


def _reference(mode, output, output_m, tensor_dists, alpha):
    """Pure-JAX reference for correctness spot-checks."""
    def kldiv_sum(inp, tgt):
        safe = jnp.where(tgt > 0, tgt, 1.0)
        return jnp.sum(jnp.where(tgt > 0, tgt * (jnp.log(safe) - inp), 0.0))

    l1 = kldiv_sum(output, tensor_dists)
    l2 = kldiv_sum(jnp.exp(output), jnp.exp(output_m))
    if mode in ("3", "4"):
        return (1.0 - alpha) * l1 + alpha * l2
    return l1


if __name__ == "__main__":
    key = jax.random.PRNGKey(0)

    # --- Test 1: lane-aligned shapes (B=2, V=128) ---
    B, V, smoothing = 2, 128, 0.1
    k1, k2, k3, k4 = jax.random.split(key, 4)
    output = jax.nn.log_softmax(jax.random.normal(k1, (B, V), jnp.float32), axis=-1)
    output_m = jax.nn.log_softmax(jax.random.normal(k2, (B, V), jnp.float32), axis=-1)
    batch_labels = [[3, 17, 42], [5, 9]]

    loss_fn = LossCompute(len_vocab=V, smoothing=smoothing)
    loss_plain = loss_fn("1", output, output_m, batch_labels)
    loss_mixed = loss_fn("3", output, output_m, batch_labels, alpha=0.02)
    jax.block_until_ready(loss_plain)
    jax.block_until_ready(loss_mixed)

    dists = loss_fn.build_dists(batch_labels)
    ref_plain = _reference("1", output, output_m, dists, 0.02)
    ref_mixed = _reference("3", output, output_m, dists, 0.02)
    assert jnp.allclose(loss_plain, ref_plain, rtol=1e-4, atol=1e-4), (loss_plain, ref_plain)
    assert jnp.allclose(loss_mixed, ref_mixed, rtol=1e-4, atol=1e-4), (loss_mixed, ref_mixed)

    # --- Test 2: non-aligned shapes exercise the in-kernel edge masking ---
    B2, V2 = 5, 300
    out2 = jax.nn.log_softmax(jax.random.normal(k3, (B2, V2), jnp.float32), axis=-1)
    outm2 = jax.nn.log_softmax(jax.random.normal(k4, (B2, V2), jnp.float32), axis=-1)
    labels2 = [[0, 7], [3], [100, 299, 5], [250], [1, 2, 3, 4]]

    loss_fn2 = LossCompute(len_vocab=V2, smoothing=smoothing)
    l2_plain = loss_fn2("1", out2, outm2, labels2)
    l2_mixed = loss_fn2("4", out2, outm2, labels2, alpha=0.05)
    jax.block_until_ready(l2_plain)
    jax.block_until_ready(l2_mixed)

    dists2 = loss_fn2.build_dists(labels2)
    r2_plain = _reference("1", out2, outm2, dists2, 0.05)
    r2_mixed = _reference("4", out2, outm2, dists2, 0.05)
    assert jnp.allclose(l2_plain, r2_plain, rtol=1e-4, atol=1e-4), (l2_plain, r2_plain)
    assert jnp.allclose(l2_mixed, r2_mixed, rtol=1e-4, atol=1e-4), (l2_mixed, r2_mixed)

    print("KERNEL_OK")
</pallas_src>

<mosaic_0001>
module attributes {stable_mosaic.version = 11 : i64} {
  func.func @_loss_kernel(%arg0: i32, %arg1: i32, %arg2: memref<2x5xf32, #tpu.memory_space<vmem>>, %arg3: memref<2x3xi32, #tpu.memory_space<vmem>>, %arg4: memref<2x128xf32, #tpu.memory_space<vmem>>, %arg5: memref<1x1x128xf32, #tpu.memory_space<vmem>>, %arg6: memref<2x128xf32, #tpu.memory_space<vmem>>) attributes {dimension_semantics = [#tpu.dimension_semantics<parallel>, #tpu.dimension_semantics<arbitrary>], iteration_bounds = array<i64: 1, 1>, scalar_prefetch = 0 : i64, scratch_operands = 1 : i64, tpu.core_type = #tpu.core_type<tc>, window_params = [{transform_indices = @transform_0, window_bounds = array<i64: 2, 5>}, {transform_indices = @transform_1, window_bounds = array<i64: 2, 3>}, {transform_indices = @transform_2, window_bounds = array<i64: 2, 128>}, {transform_indices = @transform_3, window_bounds = array<i64: 1, 1, 128>}]} {
    %c0_i32 = arith.constant 0 : i32
    %0 = arith.cmpi eq, %arg1, %c0_i32 : i32
    %1 = arith.extui %0 : i1 to i32
    %c0_i32_0 = arith.constant 0 : i32
    %2 = arith.cmpi ne, %1, %c0_i32_0 : i32
    scf.if %2 {
      %cst = arith.constant 0.000000e+00 : f32
      %43 = vector.broadcast %cst : f32 to vector<2x128xf32>
      %c0_19 = arith.constant 0 : index
      %c0_20 = arith.constant 0 : index
      %44 = vector.load %arg6[%c0_19, %c0_20] : memref<2x128xf32, #tpu.memory_space<vmem>>, vector<2x128xf32>
      tpu.vector_store %arg6[%c0_19, %c0_20], %43 {strides = array<i32>} : memref<2x128xf32, #tpu.memory_space<vmem>>, vector<2x128xf32>,
    } else {
    }
    %c0 = arith.constant 0 : index
    %c0_1 = arith.constant 0 : index
    %3 = vector.load %arg4[%c0, %c0_1] : memref<2x128xf32, #tpu.memory_space<vmem>>, vector<2x128xf32>
    %c128_i32 = arith.constant 128 : i32
    %4 = arith.muli %arg1, %c128_i32 : i32
    %5 = tpu.iota {dimensions = array<i32: 1>} : vector<2x128xi32>
    %6 = vector.broadcast %4 : i32 to vector<2x128xi32>
    %7 = arith.addi %6, %5 : vector<2x128xi32>
    %false = arith.constant false
    %8 = vector.broadcast %false : i1 to vector<2x128xi1>
    %c0_2 = arith.constant 0 : index
    %c0_3 = arith.constant 0 : index
    %9 = vector.load %arg3[%c0_2, %c0_3] : memref<2x3xi32, #tpu.memory_space<vmem>>, vector<2x1xi32>
    %10 = vector.broadcast %9 : vector<2x1xi32> to vector<2x128xi32>
    %11 = arith.cmpi eq, %10, %7 : vector<2x128xi32>
    %12 = arith.ori %8, %11 : vector<2x128xi1>
    %c0_4 = arith.constant 0 : index
    %c1 = arith.constant 1 : index
    %13 = vector.load %arg3[%c0_4, %c1] : memref<2x3xi32, #tpu.memory_space<vmem>>, vector<2x1xi32>
    %14 = vector.broadcast %13 : vector<2x1xi32> to vector<2x128xi32>
    %15 = arith.cmpi eq, %14, %7 : vector<2x128xi32>
    %16 = arith.ori %12, %15 : vector<2x128xi1>
    %c0_5 = arith.constant 0 : index
    %c2 = arith.constant 2 : index
    %17 = vector.load %arg3[%c0_5, %c2] : memref<2x3xi32, #tpu.memory_space<vmem>>, vector<2x1xi32>
    %18 = vector.broadcast %17 : vector<2x1xi32> to vector<2x128xi32>
    %19 = arith.cmpi eq, %18, %7 : vector<2x128xi32>
    %20 = arith.ori %16, %19 : vector<2x128xi1>
    %c0_6 = arith.constant 0 : index
    %c0_7 = arith.constant 0 : index
    %21 = vector.load %arg2[%c0_6, %c0_7] : memref<2x5xf32, #tpu.memory_space<vmem>>, vector<2x1xf32>
    %c0_8 = arith.constant 0 : index
    %c1_9 = arith.constant 1 : index
    %22 = vector.load %arg2[%c0_8, %c1_9] : memref<2x5xf32, #tpu.memory_space<vmem>>, vector<2x1xf32>
    %c0_10 = arith.constant 0 : index
    %c2_11 = arith.constant 2 : index
    %23 = vector.load %arg2[%c0_10, %c2_11] : memref<2x5xf32, #tpu.memory_space<vmem>>, vector<2x1xf32>
    %c0_12 = arith.constant 0 : index
    %c3 = arith.constant 3 : index
    %24 = vector.load %arg2[%c0_12, %c3] : memref<2x5xf32, #tpu.memory_space<vmem>>, vector<2x1xf32>
    %25 = vector.shape_cast %22 : vector<2x1xf32> to vector<2x1xf32>
    %26 = vector.broadcast %25 : vector<2x1xf32> to vector<2x128xf32>
    %27 = vector.shape_cast %21 : vector<2x1xf32> to vector<2x1xf32>
    %28 = vector.broadcast %27 : vector<2x1xf32> to vector<2x128xf32>
    %29 = arith.select %20, %26, %28 : vector<2x128xi1>, vector<2x128xf32>
    %30 = vector.shape_cast %24 : vector<2x1xf32> to vector<2x1xf32>
    %31 = vector.broadcast %30 : vector<2x1xf32> to vector<2x128xf32>
    %32 = vector.shape_cast %23 : vector<2x1xf32> to vector<2x1xf32>
    %33 = vector.broadcast %32 : vector<2x1xf32> to vector<2x128xf32>
    %34 = arith.select %20, %31, %33 : vector<2x128xi1>, vector<2x128xf32>
    %35 = arith.mulf %29, %3 : vector<2x128xf32>
    %36 = arith.subf %34, %35 : vector<2x128xf32>
    %c0_13 = arith.constant 0 : index
    %c0_14 = arith.constant 0 : index
    %37 = vector.load %arg6[%c0_13, %c0_14] : memref<2x128xf32, #tpu.memory_space<vmem>>, vector<2x128xf32>
    %38 = arith.addf %37, %36 : vector<2x128xf32>
    %c0_15 = arith.constant 0 : index
    %c0_16 = arith.constant 0 : index
    %39 = vector.load %arg6[%c0_15, %c0_16] : memref<2x128xf32, #tpu.memory_space<vmem>>, vector<2x128xf32>
    tpu.vector_store %arg6[%c0_15, %c0_16], %38 {strides = array<i32>} : memref<2x128xf32, #tpu.memory_space<vmem>>, vector<2x128xf32>,
    %c0_i32_17 = arith.constant 0 : i32
    %40 = arith.cmpi eq, %arg1, %c0_i32_17 : i32
    %41 = arith.extui %40 : i1 to i32
    %c0_i32_18 = arith.constant 0 : i32
    %42 = arith.cmpi ne, %41, %c0_i32_18 : i32
    scf.if %42 {
      %c0_19 = arith.constant 0 : index
      %c0_20 = arith.constant 0 : index
      %43 = vector.load %arg6[%c0_19, %c0_20] : memref<2x128xf32, #tpu.memory_space<vmem>>, vector<2x128xf32>
      %cst = arith.constant dense<0.000000e+00> : vector<128xf32>
      %44 = vector.multi_reduction <add>, %43, %cst [0] : vector<2x128xf32> to vector<128xf32>
      %45 = vector.shape_cast %44 : vector<128xf32> to vector<1x128xf32>
      %c0_21 = arith.constant 0 : index
      %c0_22 = arith.constant 0 : index
      %c0_23 = arith.constant 0 : index
      %46 = vector.load %arg5[%c0_21, %c0_22, %c0_23] : memref<1x1x128xf32, #tpu.memory_space<vmem>>, vector<1x1x128xf32>
      %47 = vector.shape_cast %46 : vector<1x1x128xf32> to vector<1x128xf32>
      %48 = vector.shape_cast %45 : vector<1x128xf32> to vector<1x1x128xf32>
      tpu.vector_store %arg5[%c0_21, %c0_22, %c0_23], %48 {strides = array<i32>} : memref<1x1x128xf32, #tpu.memory_space<vmem>>, vector<1x1x128xf32>,
    } else {
    }
    return
  }
  func.func @transform_0(%arg0: i32, %arg1: i32) -> (i32, i32) {
    %c0_i32 = arith.constant 0 : i32
    %c0_i32_0 = arith.constant 0 : i32
    return %arg0, %c0_i32 : i32, i32
  }
  func.func @transform_1(%arg0: i32, %arg1: i32) -> (i32, i32) {
    %c0_i32 = arith.constant 0 : i32
    %c0_i32_0 = arith.constant 0 : i32
    return %arg0, %c0_i32 : i32, i32
  }
  func.func @transform_2(%arg0: i32, %arg1: i32) -> (i32, i32) {
    %c0_i32 = arith.constant 0 : i32
    return %arg0, %arg1 : i32, i32
  }
  func.func @transform_3(%arg0: i32, %arg1: i32) -> (i32, i32, i32) {
    %c0_i32 = arith.constant 0 : i32
    %c0_i32_0 = arith.constant 0 : i32
    %c0_i32_1 = arith.constant 0 : i32
    return %arg0, %c0_i32, %c0_i32_0 : i32, i32, i32
  }
}

</mosaic_0001>

<llo_original>
// kernel: _loss_pallas.1
$region0: #{_loss_pallas.1}
  #allocation0 [shape = 'u32[]', space=smem, size = 0x4, offset = 0x4, fixed_abs, tag = 'smem constant byte address 0x4 - core index']
  #allocation1 [shape = 'u32[144,128]{1,0:T(1,128)}', space=vmem, size = 0x12000, scoped, tag = 'internal scratch']
  #allocation2 [shape = 'f32[2,128]{1,0:T(2,128)}', space=vmem, size = 0x400, scoped, tag = 'scratch operand']
  %s0 = inlined_call_operand.vmem [shape: f32[2,5], index: 0, kind: input, shape index: {}]
  %s1 = inlined_call_operand.vmem [shape: s32[2,3], index: 1, kind: input, shape index: {}]
  %s2 = inlined_call_operand.vmem [shape: f32[2,128], index: 2, kind: input, shape index: {}]
  %s3 = inlined_call_operand.vmem [shape: f32[1,1,128], index: 3, kind: output, shape index: {}]
  %s4 = sld [smem:[#allocation0]]
  $region30: #{_loss_pallas.1} parent=0
    _
  %s6 = ssub.s32 1, %s4
  %s7 = scalar_select 0, %s6, %s4
  // Predicated region
  $region2: #{_loss_pallas.1} parent=0 // pred_check
    _
  $region3: #{_loss_pallas.1} parent=0 // pred_check_branch
    %9 = sbr.rel (0) target = $region5
  $region4: #{_loss_pallas.1} parent=0 // pred_region
    _
  $region5: #{_loss_pallas.1} parent=0 // pred_fallthru
    _
  // Predicated region
  $region6: #{_loss_pallas.1} parent=0 // pred_check
    _
  $region7: #{_loss_pallas.1} parent=0 // pred_check_branch
    %11 = sbr.rel (0) target = $region9
  $region8: #{_loss_pallas.1} parent=0 // pred_region
    _
  $region9: #{_loss_pallas.1} parent=0 // pred_fallthru
    _
  // Predicated region
  $region10: #{_loss_pallas.1} parent=0 // pred_check
    _
  $region11: #{_loss_pallas.1} parent=0 // pred_check_branch
    %13 = sbr.rel (0) target = $region13
  $region12: #{_loss_pallas.1} parent=0 // pred_region
    _
  $region13: #{_loss_pallas.1} parent=0 // pred_fallthru
    _
  %p14 = scmp.eq.s32.totalorder 0, 0
  // Predicated region
  $region14: #{_loss_pallas.1} parent=0 // pred_check
    %p15 = pneg %p14
  $region15: #{_loss_pallas.1} parent=0 // pred_check_branch
    %17 = sbr.rel (%p15) target = $region17
  $region16: #{_loss_pallas.1} parent=0 // pred_region
    %18 = vst [vmem:[#allocation2] sm:$0x3] 0.0
  $region17: #{_loss_pallas.1} parent=0 // pred_fallthru
    _
  %v19 = vld [vmem:[%s2] sm:$0x3]
  %s20 = smul.u32 0, 128
  %v21 = vlaneseq
  %v22 = vand.u32 %v21, 127
  %v23 = vstv %s20
  %v24 = vadd.s32 %v23, %v22
  %v25 = vld [vmem:[%s1] sm:$0x3]
  %26 = vset.pattern.permute.xlu0 0
  %27 = vperm.xlu0 %26, %v25
  %v28 = vpop.permute.xlu0 %27
  %vm29 = vcmp.eq.s32.totalorder %v28, %v24
  %30 = vset.pattern.permute.xlu0 1
  %31 = vperm.xlu0 %30, %v25
  %v32 = vpop.permute.xlu0 %31
  %vm33 = vcmp.eq.s32.totalorder %v32, %v24
  %vm34 = vmor %vm29, %vm33
  %35 = vset.pattern.permute.xlu0 2
  %36 = vperm.xlu0 %35, %v25
  %v37 = vpop.permute.xlu0 %36
  %vm38 = vcmp.eq.s32.totalorder %v37, %v24
  %vm39 = vmor %vm34, %vm38
  %v40 = vld [vmem:[%s0] sm:$0x3]
  %42 = vset.pattern.permute.xlu0 1
  %43 = vperm.xlu0 %42, %v40
  %v44 = vpop.permute.xlu0 %43
  %46 = vset.pattern.permute.xlu0 0
  %47 = vperm.xlu0 %46, %v40
  %v48 = vpop.permute.xlu0 %47
  %v50 = vsel %vm39, %v44, %v48
  %51 = vset.pattern.permute.xlu0 3
  %52 = vperm.xlu0 %51, %v40
  %v53 = vpop.permute.xlu0 %52
  %55 = vset.pattern.permute.xlu0 2
  %56 = vperm.xlu0 %55, %v40
  %v57 = vpop.permute.xlu0 %56
  %v59 = vsel %vm39, %v53, %v57
  %v60 = vmul.f32 %v50, %v19
  %v61 = vsub.f32 %v59, %v60
  %v62 = vld [vmem:[#allocation2] sm:$0x3]
  %v63 = vadd.f32 %v62, %v61
  %64 = vst [vmem:[#allocation2] sm:$0x3] %v63
  // Predicated region
  $region18: #{_loss_pallas.1} parent=0 // pred_check
    %p65 = pneg %p14
  $region19: #{_loss_pallas.1} parent=0 // pred_check_branch
    %67 = sbr.rel (%p65) target = $region21
  $region20: #{_loss_pallas.1} parent=0 // pred_region
    %v68 = vld [vmem:[#allocation2] sm:$0x3]
    %vm69 = vcmask 1041408
    %v70 = vsel %vm69, %v68, 0.0
    %v71 = vrot.slane %v70, 4
    %v72 = vadd.f32 %v70, %v71
    %v73 = vrot.slane %v72, 2
    %v74 = vadd.f32 %v72, %v73
    %v75 = vrot.slane %v74, 1
    %v76 = vadd.f32 %v74, %v75
    %77 = vst [vmem:[%s3] sm:$0x1] %v76
  $region21: #{_loss_pallas.1} parent=0 // pred_fallthru
    _
  // Predicated region
  $region22: #{_loss_pallas.1} parent=0 // pred_check
    _
  $region23: #{_loss_pallas.1} parent=0 // pred_check_branch
    %79 = sbr.rel (0) target = $region25
  $region24: #{_loss_pallas.1} parent=0 // pred_region
    _
  $region25: #{_loss_pallas.1} parent=0 // pred_fallthru
    _
  // Predicated region
  $region26: #{_loss_pallas.1} parent=0 // pred_check
    _
  $region27: #{_loss_pallas.1} parent=0 // pred_check_branch
    %81 = sbr.rel (0) target = $region29
  $region28: #{_loss_pallas.1} parent=0 // pred_region
    _
  $region29: #{_loss_pallas.1} parent=0 // pred_fallthru
    _

</llo_original>
